<compile_context>
chip_gen: v7x
topology: tpu7x:2x2x1
jax: 0.10.0
libtpu: 0.0.40
codegen_flags: <defaults>
</compile_context>

<pallas_src>
import jax
import jax.numpy as jnp
from jax.experimental import pallas as pl
from jax.experimental.pallas import tpu as pltpu


def _round_up(n, m):
    return ((n + m - 1) // m) * m


def _cdiv(a, b):
    return (a + b - 1) // b


# ----------------------------- Pallas kernel ------------------------------ #
def _combined_kernel(x_ref, w1_ref, b1_ref, w2_ref, b2_ref, out_ref, h_acc):
    # x: (TB, TK) f32, w1: (TK, 2H_pad) bf16, w2: (2H_pad, D_out_pad) bf16
    k = pl.program_id(1)

    @pl.when(k == 0)
    def _():
        h_acc[...] = jnp.zeros_like(h_acc)

    # In-kernel cast: x is DMA'd as f32 (4 B/elem), cast on the VPU (free slot).
    x = x_ref[...].astype(jnp.bfloat16)

    # Fused first layer (both branches in one wide MXU matmul), f32 accumulate.
    h_acc[...] += jnp.dot(x, w1_ref[...], preferred_element_type=jnp.float32)

    @pl.when(k == pl.num_programs(1) - 1)
    def _():
        h = jnp.maximum(h_acc[...] + b1_ref[...], 0.0)          # bias + ReLU in f32
        # Fused block-diagonal second layer -> lane-dense concatenated output.
        y = jnp.dot(h.astype(w2_ref.dtype), w2_ref[...],
                    preferred_element_type=jnp.float32)
        out_ref[...] = (y + b2_ref[...]).astype(out_ref.dtype)


# --------------------------- one-time param pack --------------------------- #
def pack_params(params):
    """Pack both sub-models into fused, padded, bf16 MXU operands (call once)."""
    (w1r, b1r, w2r, b2r, w1a, b1a, w2a, b2a) = params
    D_in, H = w1r.shape
    D_rna = w2r.shape[1]
    D_adt = w2a.shape[1]
    H2 = 2 * H
    H2_pad = _round_up(H2, 128)          # lane-dense hidden width
    D_out = D_rna + D_adt
    D_out_pad = _round_up(D_out, 128)    # lane-dense output width (unmasked vst)

    w1 = jnp.zeros((D_in, H2_pad), jnp.float32)
    w1 = w1.at[:, :H].set(w1r).at[:, H:H2].set(w1a)
    b1 = jnp.zeros((1, H2_pad), jnp.float32)
    b1 = b1.at[:, :H].set(b1r).at[:, H:H2].set(b1a)

    w2 = jnp.zeros((H2_pad, D_out_pad), jnp.float32)
    w2 = w2.at[:H, :D_rna].set(w2r).at[H:H2, D_rna:D_out].set(w2a)
    b2 = jnp.zeros((1, D_out_pad), jnp.float32)
    b2 = b2.at[:, :D_rna].set(b2r).at[:, D_rna:D_out].set(b2a)

    return dict(
        w1=w1.astype(jnp.bfloat16), b1=b1,                 # biases stay f32
        w2=w2.astype(jnp.bfloat16), b2=b2,
        d_in=D_in, d_out=D_out, h2_pad=H2_pad, d_out_pad=D_out_pad,
    )


# ------------------------------ JAX wrapper -------------------------------- #
def combined_forward(x, packed, *, tb=512, out_dtype=None):
    """Runs both sub-models in one fused Pallas call; returns concat([rna, adt])."""
    B, D_in = x.shape
    assert D_in == packed["d_in"]
    w1, b1, w2, b2 = packed["w1"], packed["b1"], packed["w2"], packed["b2"]
    H2_pad, D_out_pad, D_out = packed["h2_pad"], packed["d_out_pad"], packed["d_out"]
    out_dtype = x.dtype if out_dtype is None else out_dtype

    # ---- batch tiling: balanced, 16-aligned (bf16 sublane pack), >=2 steps when possible ----
    if B < 32:
        TB = _round_up(B, 8)                               # single tile, sublane aligned
    else:
        n_tiles = max(2, _cdiv(B, tb))                     # >=2 parallel steps (v7x megacore)
        TB = min(_round_up(_cdiv(B, n_tiles), 16), _round_up(B, 16))
    B_pad = _round_up(B, TB)
    if B_pad != B:
        x = jnp.pad(x, ((0, B_pad - B), (0, 0)))

    # ---- D_in reduction tiling (only when it divides evenly in 128-multiples) ----
    TK = D_in
    if D_in > 1024 and D_in % 128 == 0:
        t = 512
        while t >= 128 and D_in % t != 0:
            t -= 128
        if t >= 128:
            TK = t
    nk = D_in // TK

    # ---- explicit VMEM budget from the actual footprint ----
    w1_bufs = 2 if nk > 1 else 1
    weights_bytes = (w1_bufs * TK * H2_pad * 2 + H2_pad * 4
                     + H2_pad * D_out_pad * 2 + D_out_pad * 4)
    io_bytes = (2 * TB * TK * x.dtype.itemsize
                + 2 * TB * D_out_pad * jnp.dtype(out_dtype).itemsize)
    scratch_bytes = TB * H2_pad * 4
    vmem_limit = int(1.5 * (weights_bytes + io_bytes + scratch_bytes)) + (2 << 20)
    vmem_limit = min(max(vmem_limit, 8 << 20), 64 << 20)   # v7x physical ceiling

    w1_mode = pl.Buffered(2) if nk > 1 else pl.Buffered(1)

    out = pl.pallas_call(
        _combined_kernel,
        out_shape=jax.ShapeDtypeStruct((B_pad, D_out_pad), out_dtype),
        grid=(B_pad // TB, nk),
        in_specs=[
            pl.BlockSpec((TB, TK), lambda i, k: (i, k)),                 # x: tiled batch/K
            pl.BlockSpec((TK, H2_pad), lambda i, k: (k, 0),
                         pipeline_mode=w1_mode),                         # fused W1
            pl.BlockSpec((1, H2_pad), lambda i, k: (0, 0),
                         pipeline_mode=pl.Buffered(1)),                  # fused b1 (resident)
            pl.BlockSpec((H2_pad, D_out_pad), lambda i, k: (0, 0),
                         pipeline_mode=pl.Buffered(1)),                  # block-diag W2 (resident)
            pl.BlockSpec((1, D_out_pad), lambda i, k: (0, 0),
                         pipeline_mode=pl.Buffered(1)),                  # fused b2 (resident)
        ],
        out_specs=pl.BlockSpec((TB, D_out_pad), lambda i, k: (i, 0)),
        scratch_shapes=[pltpu.VMEM((TB, H2_pad), jnp.float32)],
        compiler_params=pltpu.CompilerParams(
            dimension_semantics=("parallel", "arbitrary"),
            vmem_limit_bytes=vmem_limit,
        ),
    )(x, w1, b1, w2, b2)

    # Un-pad: rows back to B, columns back to the real concat(D_rna, D_adt).
    return out[:B, :D_out]


def init_params(key, d_in, hidden, d_rna, d_adt):
    ks = jax.random.split(key, 8)
    scale_in = 1.0 / jnp.sqrt(d_in)
    scale_h = 1.0 / jnp.sqrt(hidden)
    w1r = jax.random.normal(ks[0], (d_in, hidden), jnp.float32) * scale_in
    b1r = jax.random.normal(ks[1], (1, hidden), jnp.float32) * 0.01
    w2r = jax.random.normal(ks[2], (hidden, d_rna), jnp.float32) * scale_h
    b2r = jax.random.normal(ks[3], (1, d_rna), jnp.float32) * 0.01
    w1a = jax.random.normal(ks[4], (d_in, hidden), jnp.float32) * scale_in
    b1a = jax.random.normal(ks[5], (1, hidden), jnp.float32) * 0.01
    w2a = jax.random.normal(ks[6], (hidden, d_adt), jnp.float32) * scale_h
    b2a = jax.random.normal(ks[7], (1, d_adt), jnp.float32) * 0.01
    return (w1r, b1r, w2r, b2r, w1a, b1a, w2a, b2a)


if __name__ == "__main__":
    key = jax.random.PRNGKey(0)
    k_x, k_p = jax.random.split(key)

    B, D_in, H, D_rna, D_adt = 8, 32, 64, 32, 16
    x = jax.random.normal(k_x, (B, D_in), jnp.float32)
    params = init_params(k_p, D_in, H, D_rna, D_adt)

    # One-time packing (hoisted out of the forward path).
    packed = pack_params(params)

    out = combined_forward(x, packed)
    jax.block_until_ready(out)

    # --- references ---
    (w1r, b1r, w2r, b2r, w1a, b1a, w2a, b2a) = params

    # f32 reference (semantic check; loose tolerance covers bf16 MXU operands)
    ref_r = jnp.maximum(x @ w1r + b1r, 0.0) @ w2r + b2r
    ref_a = jnp.maximum(x @ w1a + b1a, 0.0) @ w2a + b2a
    ref_f32 = jnp.concatenate([ref_r, ref_a], axis=-1)

    # bf16-path reference (matches the kernel's numerics more tightly)
    xb = x.astype(jnp.bfloat16)
    hr = jnp.maximum(
        jnp.dot(xb, w1r.astype(jnp.bfloat16), preferred_element_type=jnp.float32) + b1r, 0.0)
    ha = jnp.maximum(
        jnp.dot(xb, w1a.astype(jnp.bfloat16), preferred_element_type=jnp.float32) + b1a, 0.0)
    yr = jnp.dot(hr.astype(jnp.bfloat16), w2r.astype(jnp.bfloat16),
                 preferred_element_type=jnp.float32) + b2r
    ya = jnp.dot(ha.astype(jnp.bfloat16), w2a.astype(jnp.bfloat16),
                 preferred_element_type=jnp.float32) + b2a
    ref_bf16 = jnp.concatenate([yr, ya], axis=-1)

    assert out.shape == (B, D_rna + D_adt)
    assert jnp.allclose(out, ref_f32, atol=5e-2, rtol=5e-2)
    assert jnp.allclose(out, ref_bf16, atol=2e-2, rtol=2e-2)

    print("KERNEL_OK")
</pallas_src>

<mosaic_0001>
module attributes {stable_mosaic.version = 11 : i64} {
  func.func @_combined_kernel(%arg0: i32, %arg1: i32, %arg2: memref<8x32xf32, #tpu.memory_space<vmem>>, %arg3: memref<32x128xbf16, #tpu.memory_space<vmem>>, %arg4: memref<1x128xf32, #tpu.memory_space<vmem>>, %arg5: memref<128x128xbf16, #tpu.memory_space<vmem>>, %arg6: memref<1x128xf32, #tpu.memory_space<vmem>>, %arg7: memref<8x128xf32, #tpu.memory_space<vmem>>, %arg8: memref<8x128xf32, #tpu.memory_space<vmem>>) attributes {dimension_semantics = [#tpu.dimension_semantics<parallel>, #tpu.dimension_semantics<arbitrary>], iteration_bounds = array<i64: 1, 1>, scalar_prefetch = 0 : i64, scratch_operands = 1 : i64, tpu.core_type = #tpu.core_type<tc>, window_params = [{transform_indices = @transform_0, window_bounds = array<i64: 8, 32>}, {pipeline_mode = #tpu.pipeline_mode<synchronous>, transform_indices = @transform_1, window_bounds = array<i64: 32, 128>}, {pipeline_mode = #tpu.pipeline_mode<synchronous>, transform_indices = @transform_2, window_bounds = array<i64: 1, 128>}, {pipeline_mode = #tpu.pipeline_mode<synchronous>, transform_indices = @transform_3, window_bounds = array<i64: 128, 128>}, {pipeline_mode = #tpu.pipeline_mode<synchronous>, transform_indices = @transform_4, window_bounds = array<i64: 1, 128>}, {transform_indices = @transform_5, window_bounds = array<i64: 8, 128>}]} {
    %c0_i32 = arith.constant 0 : i32
    %0 = arith.cmpi eq, %arg1, %c0_i32 : i32
    %1 = arith.extui %0 : i1 to i32
    %c0_i32_0 = arith.constant 0 : i32
    %2 = arith.cmpi ne, %1, %c0_i32_0 : i32
    scf.if %2 {
      %cst_10 = arith.constant 0.000000e+00 : f32
      %13 = vector.broadcast %cst_10 : f32 to vector<8x128xf32>
      %c0_11 = arith.constant 0 : index
      %c0_12 = arith.constant 0 : index
      %14 = vector.load %arg8[%c0_11, %c0_12] : memref<8x128xf32, #tpu.memory_space<vmem>>, vector<8x128xf32>
      tpu.vector_store %arg8[%c0_11, %c0_12], %13 {strides = array<i32>} : memref<8x128xf32, #tpu.memory_space<vmem>>, vector<8x128xf32>,
    } else {
    }
    %c0 = arith.constant 0 : index
    %c0_1 = arith.constant 0 : index
    %3 = vector.load %arg2[%c0, %c0_1] : memref<8x32xf32, #tpu.memory_space<vmem>>, vector<8x32xf32>
    %4 = arith.truncf %3 : vector<8x32xf32> to vector<8x32xbf16>
    %c0_2 = arith.constant 0 : index
    %c0_3 = arith.constant 0 : index
    %5 = vector.load %arg8[%c0_2, %c0_3] : memref<8x128xf32, #tpu.memory_space<vmem>>, vector<8x128xf32>
    %c0_4 = arith.constant 0 : index
    %c0_5 = arith.constant 0 : index
    %6 = vector.load %arg3[%c0_4, %c0_5] : memref<32x128xbf16, #tpu.memory_space<vmem>>, vector<32x128xbf16>
    %cst = arith.constant dense<0.000000e+00> : vector<8x128xf32>
    %7 = tpu.matmul %4, %6, %cst {dimension_numbers = #tpu.dot_dimension_numbers<[1], [0], [0], [1], [0, 0, 1, 1], [], []>} : vector<8x32xbf16>, vector<32x128xbf16>, vector<8x128xf32> -> vector<8x128xf32>
    %8 = arith.addf %5, %7 : vector<8x128xf32>
    %c0_6 = arith.constant 0 : index
    %c0_7 = arith.constant 0 : index
    %9 = vector.load %arg8[%c0_6, %c0_7] : memref<8x128xf32, #tpu.memory_space<vmem>>, vector<8x128xf32>
    tpu.vector_store %arg8[%c0_6, %c0_7], %8 {strides = array<i32>} : memref<8x128xf32, #tpu.memory_space<vmem>>, vector<8x128xf32>,
    %c0_i32_8 = arith.constant 0 : i32
    %10 = arith.cmpi eq, %arg1, %c0_i32_8 : i32
    %11 = arith.extui %10 : i1 to i32
    %c0_i32_9 = arith.constant 0 : i32
    %12 = arith.cmpi ne, %11, %c0_i32_9 : i32
    scf.if %12 {
      %c0_10 = arith.constant 0 : index
      %c0_11 = arith.constant 0 : index
      %13 = vector.load %arg8[%c0_10, %c0_11] : memref<8x128xf32, #tpu.memory_space<vmem>>, vector<8x128xf32>
      %c0_12 = arith.constant 0 : index
      %c0_13 = arith.constant 0 : index
      %14 = vector.load %arg4[%c0_12, %c0_13] : memref<1x128xf32, #tpu.memory_space<vmem>>, vector<1x128xf32>
      %15 = vector.broadcast %14 : vector<1x128xf32> to vector<8x128xf32>
      %16 = arith.addf %13, %15 : vector<8x128xf32>
      %cst_14 = arith.constant 0.000000e+00 : f32
      %17 = vector.broadcast %cst_14 : f32 to vector<8x128xf32>
      %18 = arith.maximumf %16, %17 : vector<8x128xf32>
      %19 = arith.truncf %18 : vector<8x128xf32> to vector<8x128xbf16>
      %c0_15 = arith.constant 0 : index
      %c0_16 = arith.constant 0 : index
      %20 = vector.load %arg5[%c0_15, %c0_16] : memref<128x128xbf16, #tpu.memory_space<vmem>>, vector<128x128xbf16>
      %cst_17 = arith.constant dense<0.000000e+00> : vector<8x128xf32>
      %21 = tpu.matmul %19, %20, %cst_17 {dimension_numbers = #tpu.dot_dimension_numbers<[1], [0], [0], [1], [0, 0, 1, 1], [], []>} : vector<8x128xbf16>, vector<128x128xbf16>, vector<8x128xf32> -> vector<8x128xf32>
      %c0_18 = arith.constant 0 : index
      %c0_19 = arith.constant 0 : index
      %22 = vector.load %arg6[%c0_18, %c0_19] : memref<1x128xf32, #tpu.memory_space<vmem>>, vector<1x128xf32>
      %23 = vector.broadcast %22 : vector<1x128xf32> to vector<8x128xf32>
      %24 = arith.addf %21, %23 : vector<8x128xf32>
      %c0_20 = arith.constant 0 : index
      %c0_21 = arith.constant 0 : index
      %25 = vector.load %arg7[%c0_20, %c0_21] : memref<8x128xf32, #tpu.memory_space<vmem>>, vector<8x128xf32>
      tpu.vector_store %arg7[%c0_20, %c0_21], %24 {strides = array<i32>} : memref<8x128xf32, #tpu.memory_space<vmem>>, vector<8x128xf32>,
    } else {
    }
    return
  }
  func.func @transform_0(%arg0: i32, %arg1: i32) -> (i32, i32) {
    %c0_i32 = arith.constant 0 : i32
    return %arg0, %arg1 : i32, i32
  }
  func.func @transform_1(%arg0: i32, %arg1: i32) -> (i32, i32) {
    %c0_i32 = arith.constant 0 : i32
    %c0_i32_0 = arith.constant 0 : i32
    return %arg1, %c0_i32 : i32, i32
  }
  func.func @transform_2(%arg0: i32, %arg1: i32) -> (i32, i32) {
    %c0_i32 = arith.constant 0 : i32
    %c0_i32_0 = arith.constant 0 : i32
    %c0_i32_1 = arith.constant 0 : i32
    return %c0_i32, %c0_i32_0 : i32, i32
  }
  func.func @transform_3(%arg0: i32, %arg1: i32) -> (i32, i32) {
    %c0_i32 = arith.constant 0 : i32
    %c0_i32_0 = arith.constant 0 : i32
    %c0_i32_1 = arith.constant 0 : i32
    return %c0_i32, %c0_i32_0 : i32, i32
  }
  func.func @transform_4(%arg0: i32, %arg1: i32) -> (i32, i32) {
    %c0_i32 = arith.constant 0 : i32
    %c0_i32_0 = arith.constant 0 : i32
    %c0_i32_1 = arith.constant 0 : i32
    return %c0_i32, %c0_i32_0 : i32, i32
  }
  func.func @transform_5(%arg0: i32, %arg1: i32) -> (i32, i32) {
    %c0_i32 = arith.constant 0 : i32
    %c0_i32_0 = arith.constant 0 : i32
    return %arg0, %c0_i32 : i32, i32
  }
}

</mosaic_0001>

<llo_original>
// kernel: tpu_custom_call.1
$region0: #{tpu_custom_call.1}
  #allocation0 [shape = 'u32[]', space=smem, size = 0x4, offset = 0x4, fixed_abs, tag = 'smem constant byte address 0x4 - core index']
  #allocation1 [shape = 'u32[144,128]{1,0:T(1,128)}', space=vmem, size = 0x12000, scoped, tag = 'internal scratch']
  #allocation2 [shape = 'f32[8,128]{1,0:T(8,128)}', space=vmem, size = 0x1000, scoped, tag = 'scratch operand']
  %s0 = inlined_call_operand.hbm [shape: f32[8,32], index: 0, kind: input, shape index: {}]
  %s1 = inlined_call_operand.hbm [shape: bf16[32,128], index: 1, kind: input, shape index: {}]
  %s2 = inlined_call_operand.vmem [shape: f32[1,128], index: 2, kind: input, shape index: {}]
  %s3 = inlined_call_operand.hbm [shape: bf16[128,128], index: 3, kind: input, shape index: {}]
  %s4 = inlined_call_operand.vmem [shape: f32[1,128], index: 4, kind: input, shape index: {}]
  %s5 = inlined_call_operand.hbm [shape: f32[8,128], index: 5, kind: output, shape index: {}]
  %s6 = sld [smem:[#allocation0]]
  $region50: #{tpu_custom_call.1} parent=0
    _
  %s8 = ssub.s32 1, %s6
  %s9 = scalar_select 0, %s8, %s6
  $region1: #{tpu_custom_call.1} parent=0
    #allocation3 [shape = 'u8[4096]{0}', space=vmem, size = 0x1000, scoped, tag = 'input window, operand 0, single buffered']
    #allocation4 [shape = 's32[1]{0}', space=sflag, size = 0x4, scoped, tag = 'scoped memory for tpu_custom_call.1']
    #allocation5 [shape = 's32[1]{0}', space=sflag, size = 0x4, scoped, tag = 'scoped memory for tpu_custom_call.1']
    #allocation6 [shape = 'u8[8192]{0}', space=vmem, size = 0x2000, scoped, tag = 'input window, operand 1, single buffered']
    #allocation7 [shape = 's32[1]{0}', space=sflag, size = 0x4, scoped, tag = 'scoped memory for tpu_custom_call.1']
    #allocation8 [shape = 'u8[32768]{0}', space=vmem, size = 0x8000, scoped, tag = 'input window, operand 3, single buffered']
    #allocation9 [shape = 'u8[4096]{0}', space=vmem, size = 0x1000, scoped, tag = 'output window, operand 0, single buffered']
    %10 = vsyncpa [#allocation4], 0
    %11 = vsyncpa [#allocation7], 0
    %12 = vsyncpa [#allocation5], 0
    // Predicated region
    $region2: #{tpu_custom_call.1} parent=1 // pred_check
      _
    $region3: #{tpu_custom_call.1} parent=1 // pred_check_branch
      %14 = sbr.rel (0) target = $region5
    $region4: #{tpu_custom_call.1} parent=1 // pred_region
      %s16 = ssub.s32 128, 128
      %17 = vsyncadd [#allocation4], %s16
      %s19 = sshll.u32 [#allocation3], 4
      %s20 = int_to_ptr.vmem [resolvable:$true] %s19
      %22 = dma.hbm_to_vmem [thread:$0]  %s0, 128, %s20, [#allocation4]
    $region5: #{tpu_custom_call.1} parent=1 // pred_fallthru
      _
    // Predicated region
    $region6: #{tpu_custom_call.1} parent=1 // pred_check
      _
    $region7: #{tpu_custom_call.1} parent=1 // pred_check_branch
      %24 = sbr.rel (0) target = $region9
    $region8: #{tpu_custom_call.1} parent=1 // pred_region
      %s26 = ssub.s32 256, 256
      %27 = vsyncadd [#allocation7], %s26
      %s28 = sshll.u32 [#allocation6], 4
      %s29 = int_to_ptr.vmem [resolvable:$true] %s28
      %34 = dma.hbm_to_vmem [thread:$0]  %s1, 256, %s29, [#allocation7], 64, 64, 4
    $region9: #{tpu_custom_call.1} parent=1 // pred_fallthru
      _
    // Predicated region
    $region10: #{tpu_custom_call.1} parent=1 // pred_check
      _
    $region11: #{tpu_custom_call.1} parent=1 // pred_check_branch
      %36 = sbr.rel (0) target = $region13
    $region12: #{tpu_custom_call.1} parent=1 // pred_region
      _
    $region13: #{tpu_custom_call.1} parent=1 // pred_fallthru
      _
    // Predicated region
    $region14: #{tpu_custom_call.1} parent=1 // pred_check
      _
    $region15: #{tpu_custom_call.1} parent=1 // pred_check_branch
      %38 = sbr.rel (0) target = $region17
    $region16: #{tpu_custom_call.1} parent=1 // pred_region
      %s40 = ssub.s32 1024, 1024
      %41 = vsyncadd [#allocation7], %s40
      %s42 = sshll.u32 [#allocation8], 4
      %s43 = int_to_ptr.vmem [resolvable:$true] %s42
      %48 = dma.hbm_to_vmem [thread:$0]  %s3, 1024, %s43, [#allocation7], 64, 64, 4
    $region17: #{tpu_custom_call.1} parent=1 // pred_fallthru
      _
    // Predicated region
    $region18: #{tpu_custom_call.1} parent=1 // pred_check
      _
    $region19: #{tpu_custom_call.1} parent=1 // pred_check_branch
      %50 = sbr.rel (0) target = $region21
    $region20: #{tpu_custom_call.1} parent=1 // pred_region
      _
    $region21: #{tpu_custom_call.1} parent=1 // pred_fallthru
      _
    // Predicated region
    $region22: #{tpu_custom_call.1} parent=1 // pred_check
      _
    $region23: #{tpu_custom_call.1} parent=1 // pred_check_branch
      %52 = sbr.rel (0) target = $region25
    $region24: #{tpu_custom_call.1} parent=1 // pred_region
      %53 = dma.done [#allocation4], 128
    $region25: #{tpu_custom_call.1} parent=1 // pred_fallthru
      _
    // Predicated region
    $region26: #{tpu_custom_call.1} parent=1 // pred_check
      _
    $region27: #{tpu_custom_call.1} parent=1 // pred_check_branch
      %55 = sbr.rel (0) target = $region29
    $region28: #{tpu_custom_call.1} parent=1 // pred_region
      %56 = dma.done [#allocation7], 256
    $region29: #{tpu_custom_call.1} parent=1 // pred_fallthru
      _
    // Predicated region
    $region30: #{tpu_custom_call.1} parent=1 // pred_check
      _
    $region31: #{tpu_custom_call.1} parent=1 // pred_check_branch
      %58 = sbr.rel (0) target = $region33
    $region32: #{tpu_custom_call.1} parent=1 // pred_region
      %59 = dma.done [#allocation7], 1024
    $region33: #{tpu_custom_call.1} parent=1 // pred_fallthru
      _
    %p61 = scmp.eq.s32.totalorder 0, 0
    // Predicated region
    $region34: #{tpu_custom_call.1} parent=1 // pred_check
      %p62 = pneg %p61
    $region35: #{tpu_custom_call.1} parent=1 // pred_check_branch
      %64 = sbr.rel (%p62) target = $region37
    $region36: #{tpu_custom_call.1} parent=1 // pred_region
      %65 = vst [vmem:[#allocation2] sm:$0xff] 0.0
    $region37: #{tpu_custom_call.1} parent=1 // pred_fallthru
      _
    %v66 = vld [vmem:[#allocation3] sm:$0xff]
    %v67 = vpack.c.bf16 %v66, %v66
    %v68 = vld [vmem:[#allocation2] sm:$0xff]
    %v69 = vld [vmem:[#allocation6] sm:$0xf]
    %v70 = vld [vmem:[#allocation6 + $0x4] sm:$0xf]
    %v71 = vld [vmem:[#allocation6 + $0x8] sm:$0xf]
    %v72 = vld [vmem:[#allocation6 + $0xc] sm:$0xf]
    %v77 = vunpack.c.l.b16 %v69
    %v78 = vunpack.c.l.b16 %v70
    %v79 = vunpack.c.l.b16 %v71
    %v80 = vunpack.c.l.b16 %v72
    %v81 = vpack.c.b16 %v78, %v77
    %v82 = vpack.c.b16 %v80, %v79
    %vm85 = vcmask 261120
    %v87 = vsel %vm85, %v67, 0
    %89 = vmatprep.subr.bf16.mxu0 0
    %90 = vmatpush1.bf16.msra.mxu0 %v81
    %91 = vmatprep.subr.bf16.mxu0 0
    %92 = vmatpush1.bf16.msra.mxu0 %v82
    %93 = vmatprep.subr.bf16.mxu0 0
    %94 = vmatpush1.bf16.msra.mxu0 0
    %95 = vmatprep.subr.bf16.mxu0 0
    %96 = vmatpush1.bf16.msra.mxu0 0
    %97 = vmatprep.subr.bf16.mxu0 0
    %98 = vmatpush1.bf16.msra.mxu0 0
    %99 = vmatprep.subr.bf16.mxu0 0
    %100 = vmatpush1.bf16.msra.mxu0 0
    %101 = vmatprep.subr.bf16.mxu0 0
    %102 = vmatpush1.bf16.msra.mxu0 0
    %103 = vmatprep.subr.bf16.mxu0 0
    %104 = vmatpush1.bf16.msra.mxu0 0
    %105 = vmatprep.subr.bf16.mxu0 0
    %106 = vmatpush1.bf16.msra.mxu0 0
    %107 = vmatprep.subr.bf16.mxu0 0
    %108 = vmatpush1.bf16.msra.mxu0 0
    %109 = vmatprep.subr.bf16.mxu0 0
    %110 = vmatpush1.bf16.msra.mxu0 0
    %111 = vmatprep.subr.bf16.mxu0 0
    %112 = vmatpush1.bf16.msra.mxu0 0
    %113 = vmatprep.subr.bf16.mxu0 0
    %114 = vmatpush1.bf16.msra.mxu0 0
    %115 = vmatprep.subr.bf16.mxu0 0
    %116 = vmatpush1.bf16.msra.mxu0 0
    %117 = vmatprep.subr.bf16.mxu0 0
    %118 = vmatpush1.bf16.msra.mxu0 0
    %119 = vmatprep.subr.bf16.mxu0 0
    %120 = vmatpush1.bf16.msra.mxu0 0
    %121 = vmatprep.mubr.bf16.mxu0 0
    %122 = vmatmul.mubr.bf16.gmra.mrb[0].mxu0 %v87
    %v123 = vpop.f32.mrb[0].mxu0
    %v124 = vadd.f32 0.0, %v123
    %v125 = vpop.f32.mrb[0].mxu0
    %v126 = vpop.f32.mrb[0].mxu0
    %v127 = vpop.f32.mrb[0].mxu0
    %128 = vdwg.mxu0
    %v129 = vadd.f32 %v68, %v124
    %130 = vst [vmem:[#allocation2] sm:$0xff] %v129
    // Predicated region
    $region38: #{tpu_custom_call.1} parent=1 // pred_check
      %p131 = pneg %p61
    $region39: #{tpu_custom_call.1} parent=1 // pred_check_branch
      %133 = sbr.rel (%p131) target = $region41
    $region40: #{tpu_custom_call.1} parent=1 // pred_region
      %v134 = vld [vmem:[#allocation2] sm:$0xff]
      %v135 = vld [vmem:[%s2] sm:$0x1]
      %v137 = vlaneseq
      %v138 = vshrl.u32 %v137, 7
      %v139 = vsub.s32 0, %v138
      %v140 = vrot.slane %v135, %v139
      %v142 = vadd.f32 %v134, %v140
      %v143 = vmax.f32 %v142, 0.0
      %v144 = vpack.c.bf16 %v143, %v143
      %v145 = vld [vmem:[#allocation8] sm:$0xf]
      %v146 = vld [vmem:[#allocation8 + $0x4] sm:$0xf]
      %v147 = vld [vmem:[#allocation8 + $0x8] sm:$0xf]
      %v148 = vld [vmem:[#allocation8 + $0xc] sm:$0xf]
      %v149 = vld [vmem:[#allocation8 + $0x10] sm:$0xf]
      %v150 = vld [vmem:[#allocation8 + $0x14] sm:$0xf]
      %v151 = vld [vmem:[#allocation8 + $0x18] sm:$0xf]
      %v152 = vld [vmem:[#allocation8 + $0x1c] sm:$0xf]
      %v153 = vld [vmem:[#allocation8 + $0x20] sm:$0xf]
      %v154 = vld [vmem:[#allocation8 + $0x24] sm:$0xf]
      %v155 = vld [vmem:[#allocation8 + $0x28] sm:$0xf]
      %v156 = vld [vmem:[#allocation8 + $0x2c] sm:$0xf]
      %v157 = vld [vmem:[#allocation8 + $0x30] sm:$0xf]
      %v158 = vld [vmem:[#allocation8 + $0x34] sm:$0xf]
      %v159 = vld [vmem:[#allocation8 + $0x38] sm:$0xf]
      %v160 = vld [vmem:[#allocation8 + $0x3c] sm:$0xf]
      %v161 = vld [vmem:[%s4] sm:$0x1]
      %v163 = vlaneseq
      %v164 = vshrl.u32 %v163, 7
      %v165 = vsub.s32 0, %v164
      %v166 = vrot.slane %v161, %v165
      %v184 = vunpack.c.l.b16 %v145
      %v185 = vunpack.c.l.b16 %v146
      %v186 = vunpack.c.l.b16 %v147
      %v187 = vunpack.c.l.b16 %v148
      %v188 = vunpack.c.l.b16 %v149
      %v189 = vunpack.c.l.b16 %v150
      %v190 = vunpack.c.l.b16 %v151
      %v191 = vunpack.c.l.b16 %v152
      %v192 = vunpack.c.l.b16 %v153
      %v193 = vunpack.c.l.b16 %v154
      %v194 = vunpack.c.l.b16 %v155
      %v195 = vunpack.c.l.b16 %v156
      %v196 = vunpack.c.l.b16 %v157
      %v197 = vunpack.c.l.b16 %v158
      %v198 = vunpack.c.l.b16 %v159
      %v199 = vunpack.c.l.b16 %v160
      %v200 = vpack.c.b16 %v185, %v184
      %v201 = vpack.c.b16 %v187, %v186
      %v202 = vpack.c.b16 %v189, %v188
      %v203 = vpack.c.b16 %v191, %v190
      %v204 = vpack.c.b16 %v193, %v192
      %v205 = vpack.c.b16 %v195, %v194
      %v206 = vpack.c.b16 %v197, %v196
      %v207 = vpack.c.b16 %v199, %v198
      %216 = vmatprep.subr.bf16.mxu0 0
      %217 = vmatpush1.bf16.msra.mxu0 %v200
      %218 = vmatprep.subr.bf16.mxu0 0
      %219 = vmatpush1.bf16.msra.mxu0 %v201
      %220 = vmatprep.subr.bf16.mxu0 0
      %221 = vmatpush1.bf16.msra.mxu0 %v202
      %222 = vmatprep.subr.bf16.mxu0 0
      %223 = vmatpush1.bf16.msra.mxu0 %v203
      %224 = vmatprep.subr.bf16.mxu0 0
      %225 = vmatpush1.bf16.msra.mxu0 %v204
      %226 = vmatprep.subr.bf16.mxu0 0
      %227 = vmatpush1.bf16.msra.mxu0 %v205
      %228 = vmatprep.subr.bf16.mxu0 0
      %229 = vmatpush1.bf16.msra.mxu0 %v206
      %230 = vmatprep.subr.bf16.mxu0 0
      %231 = vmatpush1.bf16.msra.mxu0 %v207
      %232 = vmatprep.subr.bf16.mxu0 0
      %233 = vmatpush1.bf16.msra.mxu0 0
      %234 = vmatprep.subr.bf16.mxu0 0
      %235 = vmatpush1.bf16.msra.mxu0 0
      %236 = vmatprep.subr.bf16.mxu0 0
      %237 = vmatpush1.bf16.msra.mxu0 0
      %238 = vmatprep.subr.bf16.mxu0 0
      %239 = vmatpush1.bf16.msra.mxu0 0
      %240 = vmatprep.subr.bf16.mxu0 0
      %241 = vmatpush1.bf16.msra.mxu0 0
      %242 = vmatprep.subr.bf16.mxu0 0
      %243 = vmatpush1.bf16.msra.mxu0 0
      %244 = vmatprep.subr.bf16.mxu0 0
      %245 = vmatpush1.bf16.msra.mxu0 0
      %246 = vmatprep.subr.bf16.mxu0 0
      %247 = vmatpush1.bf16.msra.mxu0 0
      %248 = vmatprep.mubr.bf16.mxu0 0
      %249 = vmatmul.mubr.bf16.gmra.mrb[0].mxu0 %v144
      %v250 = vpop.f32.mrb[0].mxu0
      %v251 = vadd.f32 %v166, %v250
      %v252 = vpop.f32.mrb[0].mxu0
      %v253 = vpop.f32.mrb[0].mxu0
      %v254 = vpop.f32.mrb[0].mxu0
      %255 = vdwg.mxu0
      %256 = vst [vmem:[#allocation9] sm:$0xff] %v251
    $region41: #{tpu_custom_call.1} parent=1 // pred_fallthru
      _
    // Predicated region
    $region42: #{tpu_custom_call.1} parent=1 // pred_check
      _
    $region43: #{tpu_custom_call.1} parent=1 // pred_check_branch
      %258 = sbr.rel (0) target = $region45
    $region44: #{tpu_custom_call.1} parent=1 // pred_region
      %s260 = ssub.s32 128, 128
      %261 = vsyncadd [#allocation5], %s260
      %s263 = sshll.u32 [#allocation9], 4
      %s264 = int_to_ptr.vmem [resolvable:$true] %s263
      %266 = dma.vmem_to_hbm [thread:$0]  %s264, 128, %s5, [#allocation5]
    $region45: #{tpu_custom_call.1} parent=1 // pred_fallthru
      _
    // Predicated region
    $region46: #{tpu_custom_call.1} parent=1 // pred_check
      _
    $region47: #{tpu_custom_call.1} parent=1 // pred_check_branch
      %268 = sbr.rel (0) target = $region49
    $region48: #{tpu_custom_call.1} parent=1 // pred_region
      %269 = dma.done [#allocation5], 128
    $region49: #{tpu_custom_call.1} parent=1 // pred_fallthru
      _
    %270 = vsyncpa [#allocation4], 1
    %271 = vsyncpa [#allocation7], 1
    %272 = vsyncpa [#allocation5], 1

</llo_original>
